<compile_context>
chip_gen: v6e
topology: v6e:2x2x1
jax: 0.10.0
libtpu: 0.0.40
codegen_flags: <defaults>
</compile_context>

<pallas_src>
import functools
import math

import jax
import jax.numpy as jnp
from jax.experimental import pallas as pl
from jax.experimental.pallas import tpu as pltpu

BN_EPS = 1e-5  # torch.nn.BatchNorm1d default


def _round_up(x, m):
    return ((x + m - 1) // m) * m


def _pad2(a, target_shape):
    pads = [(0, t - s) for s, t in zip(a.shape, target_shape)]
    return jnp.pad(a, pads)


# --------------------------------------------------------------------------------------
# Pass 1: Linear (bf16 MXU, f32 accumulate) + per-channel sum / sumsq -> [mean; inv_std]
# --------------------------------------------------------------------------------------
def linear_stats_kernel(x_ref, w_ref, b_ref, y_ref, stats_ref, *, n_valid):
    i = pl.program_id(0)
    tile_n, e_pad = y_ref.shape

    @pl.when(i == 0)
    def _init():
        stats_ref[...] = jnp.zeros_like(stats_ref)

    # MXU matmul in bf16 with f32 accumulation; bias add & everything after in f32.
    x = x_ref[...].astype(jnp.bfloat16)
    w = w_ref[...].astype(jnp.bfloat16)
    y = jnp.dot(x, w, preferred_element_type=jnp.float32) + b_ref[...]
    y_ref[...] = y

    # Mask rows past the true N (row padding) so they do not pollute the batch stats.
    row = jax.lax.broadcasted_iota(jnp.int32, (tile_n, e_pad), 0) + i * tile_n
    mask = (row < n_valid).astype(jnp.float32)
    ym = y * mask
    s = jnp.sum(ym, axis=0, keepdims=True)           # sum(y)        (1, E)
    ss = jnp.sum(ym * y, axis=0, keepdims=True)      # sum(y*y)      (1, E)
    stats_ref[...] = stats_ref[...] + jnp.concatenate([s, ss], axis=0)

    @pl.when(i == pl.num_programs(0) - 1)
    def _finalize():
        st = stats_ref[...]
        inv_n = 1.0 / float(n_valid)
        mean = st[0:1, :] * inv_n
        var = st[1:2, :] * inv_n - mean * mean       # one-pass biased variance
        inv_std = jax.lax.rsqrt(var + BN_EPS)
        stats_ref[...] = jnp.concatenate([mean, inv_std], axis=0)


# --------------------------------------------------------------------------------------
# Pass 2: normalize + ReLU (embarrassingly parallel over row tiles)
# --------------------------------------------------------------------------------------
def bn_relu_kernel(y_ref, stats_ref, o_ref):
    y = y_ref[...]
    st = stats_ref[...]
    mean = st[0:1, :]
    inv_std = st[1:2, :]
    o_ref[...] = jnp.maximum((y - mean) * inv_std, 0.0).astype(o_ref.dtype)


# --------------------------------------------------------------------------------------
# Wrapper
# --------------------------------------------------------------------------------------
def v_encoder_forward(src, w_t, bias, *, tile_n_max=512):
    """src: (B, T, F) f32.  w_t: (F, E) pre-transposed Linear weight.  bias: (E,)."""
    B, T, F = src.shape
    E = w_t.shape[1]
    N = B * T

    F_pad = _round_up(F, 128)
    E_pad = _round_up(E, 128)
    # Largest row tile up to tile_n_max (sized well under the 32 MiB scoped / 64 MiB v7x
    # VMEM budget with double-buffered x/y tiles + resident weight), multiple of 8.
    tile_n = min(tile_n_max, _round_up(N, 8))
    n_pad = _round_up(N, tile_n)
    n_tiles = n_pad // tile_n

    x2d = _pad2(src.reshape(N, F), (n_pad, F_pad))
    w_p = _pad2(w_t, (F_pad, E_pad))
    b_p = _pad2(bias.reshape(1, E), (1, E_pad))

    # ---- Pass 1: linear + batch-stat accumulation (reduction over the N-tile grid) ----
    y_pad, stats = pl.pallas_call(
        functools.partial(linear_stats_kernel, n_valid=N),
        out_shape=(
            jax.ShapeDtypeStruct((n_pad, E_pad), jnp.float32),   # linear output (intermediate)
            jax.ShapeDtypeStruct((2, E_pad), jnp.float32),       # [mean; inv_std]
        ),
        grid_spec=pltpu.PrefetchScalarGridSpec(
            num_scalar_prefetch=0,
            grid=(n_tiles,),
            in_specs=[
                pl.BlockSpec((tile_n, F_pad), lambda i: (i, 0)),   # x: streams over N
                pl.BlockSpec((F_pad, E_pad), lambda i: (0, 0)),    # W: resident
                pl.BlockSpec((1, E_pad), lambda i: (0, 0)),        # b: resident
            ],
            out_specs=[
                pl.BlockSpec((tile_n, E_pad), lambda i: (i, 0)),   # y: streams over N
                pl.BlockSpec((2, E_pad), lambda i: (0, 0)),        # stats: resident accumulator
            ],
        ),
        compiler_params=pltpu.CompilerParams(
            dimension_semantics=("arbitrary",)),
        cost_estimate=pl.CostEstimate(
            flops=2 * n_pad * F_pad * E_pad,
            transcendentals=E_pad,
            bytes_accessed=4 * (n_pad * F_pad + F_pad * E_pad + E_pad
                                + n_pad * E_pad + 2 * E_pad)),
    )(x2d, w_p, b_p)

    # ---- Pass 2: normalize + ReLU ----
    out_pad = pl.pallas_call(
        bn_relu_kernel,
        out_shape=jax.ShapeDtypeStruct((n_pad, E_pad), jnp.float32),
        grid_spec=pltpu.PrefetchScalarGridSpec(
            num_scalar_prefetch=0,
            grid=(n_tiles,),
            in_specs=[
                pl.BlockSpec((tile_n, E_pad), lambda i: (i, 0)),   # y: streams
                pl.BlockSpec((2, E_pad), lambda i: (0, 0)),        # stats: resident
            ],
            out_specs=pl.BlockSpec((tile_n, E_pad), lambda i: (i, 0)),
        ),
        compiler_params=pltpu.CompilerParams(
            dimension_semantics=("parallel",)),      # megacore-shardable on v7x
        cost_estimate=pl.CostEstimate(
            flops=3 * n_pad * E_pad,
            transcendentals=0,
            bytes_accessed=4 * (2 * n_pad * E_pad + 2 * E_pad)),
    )(y_pad, stats)

    return out_pad[:N, :E].reshape(B, T, E)


def init_params(key, feature_size, emb_size):
    """Deterministic init mirroring the PyTorch module:
    Linear.weight: xavier_uniform_ with gain = calculate_gain('relu') = sqrt(2)
    Linear.bias:   torch default  U(-1/sqrt(fan_in), 1/sqrt(fan_in))
    BatchNorm1d:   weight=1, bias=0 (identity affine, folded into the kernel)."""
    k_w, k_b = jax.random.split(key)
    gain = math.sqrt(2.0)
    bound_w = gain * math.sqrt(6.0 / (feature_size + emb_size))
    # PyTorch weight shape is (E, F); store transposed (F, E) for the kernel matmul.
    w = jax.random.uniform(k_w, (emb_size, feature_size), jnp.float32,
                           minval=-bound_w, maxval=bound_w)
    bound_b = 1.0 / math.sqrt(feature_size)
    b = jax.random.uniform(k_b, (emb_size,), jnp.float32,
                           minval=-bound_b, maxval=bound_b)
    return w.T, b


if __name__ == "__main__":
    B, T = 2, 8
    feature_size, emb_size = 32, 64

    key = jax.random.PRNGKey(0)
    k_x, k_p = jax.random.split(key)

    src = jax.random.normal(k_x, (B, T, feature_size), dtype=jnp.float32)
    w_t, bias = init_params(k_p, feature_size, emb_size)

    out = v_encoder_forward(src, w_t, bias)
    jax.block_until_ready(out)

    # Sanity check against a plain-JAX reference using the same bf16-MXU / f32-accumulate
    # matmul precision and one-pass batch variance.
    x2d = src.reshape(-1, feature_size)
    y_ref = jnp.dot(x2d.astype(jnp.bfloat16), w_t.astype(jnp.bfloat16),
                    preferred_element_type=jnp.float32) + bias
    mean = y_ref.mean(0, keepdims=True)
    var = (y_ref * y_ref).mean(0, keepdims=True) - mean * mean
    ref = jnp.maximum((y_ref - mean) * jax.lax.rsqrt(var + BN_EPS), 0.0)
    ref = ref.reshape(B, T, emb_size)
    assert out.shape == (B, T, emb_size)
    assert jnp.allclose(out, ref, atol=2e-3, rtol=2e-3)
    assert bool(jnp.all(jnp.isfinite(out)))

    print("KERNEL_OK")
</pallas_src>

<mosaic_0001>
module attributes {stable_mosaic.version = 11 : i64} {
  func.func @linear_stats_kernel(%arg0: i32, %arg1: memref<16x128xf32, #tpu.memory_space<vmem>>, %arg2: memref<128x128xf32, #tpu.memory_space<vmem>>, %arg3: memref<1x128xf32, #tpu.memory_space<vmem>>, %arg4: memref<16x128xf32, #tpu.memory_space<vmem>>, %arg5: memref<2x128xf32, #tpu.memory_space<vmem>>) attributes {dimension_semantics = [#tpu.dimension_semantics<arbitrary>], iteration_bounds = array<i64: 1>, scalar_prefetch = 0 : i64, scratch_operands = 0 : i64, tpu.core_type = #tpu.core_type<tc>, window_params = [{transform_indices = @transform_0, window_bounds = array<i64: 16, 128>}, {pipeline_mode = #tpu.pipeline_mode<synchronous>, transform_indices = @transform_1, window_bounds = array<i64: 128, 128>}, {pipeline_mode = #tpu.pipeline_mode<synchronous>, transform_indices = @transform_2, window_bounds = array<i64: 1, 128>}, {transform_indices = @transform_3, window_bounds = array<i64: 16, 128>}, {pipeline_mode = #tpu.pipeline_mode<synchronous>, transform_indices = @transform_4, window_bounds = array<i64: 2, 128>}]} {
    %c0_i32 = arith.constant 0 : i32
    %0 = arith.cmpi eq, %arg0, %c0_i32 : i32
    %1 = arith.extui %0 : i1 to i32
    %c0_i32_0 = arith.constant 0 : i32
    %2 = arith.cmpi ne, %1, %c0_i32_0 : i32
    scf.if %2 {
      %cst_17 = arith.constant 0.000000e+00 : f32
      %33 = vector.broadcast %cst_17 : f32 to vector<2x128xf32>
      %c0_18 = arith.constant 0 : index
      %c0_19 = arith.constant 0 : index
      %34 = vector.load %arg5[%c0_18, %c0_19] : memref<2x128xf32, #tpu.memory_space<vmem>>, vector<2x128xf32>
      tpu.vector_store %arg5[%c0_18, %c0_19], %33 {strides = array<i32>} : memref<2x128xf32, #tpu.memory_space<vmem>>, vector<2x128xf32>,
    } else {
    }
    %c0 = arith.constant 0 : index
    %c0_1 = arith.constant 0 : index
    %3 = vector.load %arg1[%c0, %c0_1] : memref<16x128xf32, #tpu.memory_space<vmem>>, vector<16x128xf32>
    %4 = arith.truncf %3 : vector<16x128xf32> to vector<16x128xbf16>
    %c0_2 = arith.constant 0 : index
    %c0_3 = arith.constant 0 : index
    %5 = vector.load %arg2[%c0_2, %c0_3] : memref<128x128xf32, #tpu.memory_space<vmem>>, vector<128x128xf32>
    %6 = arith.truncf %5 : vector<128x128xf32> to vector<128x128xbf16>
    %cst = arith.constant dense<0.000000e+00> : vector<16x128xf32>
    %7 = tpu.matmul %4, %6, %cst {dimension_numbers = #tpu.dot_dimension_numbers<[1], [0], [0], [1], [0, 0, 1, 1], [], []>} : vector<16x128xbf16>, vector<128x128xbf16>, vector<16x128xf32> -> vector<16x128xf32>
    %c0_4 = arith.constant 0 : index
    %c0_5 = arith.constant 0 : index
    %8 = vector.load %arg3[%c0_4, %c0_5] : memref<1x128xf32, #tpu.memory_space<vmem>>, vector<1x128xf32>
    %9 = vector.broadcast %8 : vector<1x128xf32> to vector<16x128xf32>
    %10 = arith.addf %7, %9 : vector<16x128xf32>
    %c0_6 = arith.constant 0 : index
    %c0_7 = arith.constant 0 : index
    %11 = vector.load %arg4[%c0_6, %c0_7] : memref<16x128xf32, #tpu.memory_space<vmem>>, vector<16x128xf32>
    tpu.vector_store %arg4[%c0_6, %c0_7], %10 {strides = array<i32>} : memref<16x128xf32, #tpu.memory_space<vmem>>, vector<16x128xf32>,
    %12 = tpu.iota {dimensions = array<i32: 0>} : vector<16x128xi32>
    %c16_i32 = arith.constant 16 : i32
    %13 = arith.muli %arg0, %c16_i32 : i32
    %14 = vector.broadcast %13 : i32 to vector<16x128xi32>
    %15 = arith.addi %12, %14 : vector<16x128xi32>
    %c16_i32_8 = arith.constant 16 : i32
    %16 = vector.broadcast %c16_i32_8 : i32 to vector<16x128xi32>
    %17 = arith.cmpi slt, %15, %16 : vector<16x128xi32>
    %18 = arith.extui %17 : vector<16x128xi1> to vector<16x128xi32>
    %19 = arith.sitofp %18 : vector<16x128xi32> to vector<16x128xf32>
    %20 = arith.mulf %10, %19 : vector<16x128xf32>
    %cst_9 = arith.constant dense<0.000000e+00> : vector<128xf32>
    %21 = vector.multi_reduction <add>, %20, %cst_9 [0] : vector<16x128xf32> to vector<128xf32>
    %22 = vector.shape_cast %21 : vector<128xf32> to vector<1x128xf32>
    %23 = arith.mulf %20, %10 : vector<16x128xf32>
    %cst_10 = arith.constant dense<0.000000e+00> : vector<128xf32>
    %24 = vector.multi_reduction <add>, %23, %cst_10 [0] : vector<16x128xf32> to vector<128xf32>
    %25 = vector.shape_cast %24 : vector<128xf32> to vector<1x128xf32>
    %c0_11 = arith.constant 0 : index
    %c0_12 = arith.constant 0 : index
    %26 = vector.load %arg5[%c0_11, %c0_12] : memref<2x128xf32, #tpu.memory_space<vmem>>, vector<2x128xf32>
    %27 = tpu.concatenate %22, %25 in 0 : vector<1x128xf32>, vector<1x128xf32> -> vector<2x128xf32>
    %28 = arith.addf %26, %27 : vector<2x128xf32>
    %c0_13 = arith.constant 0 : index
    %c0_14 = arith.constant 0 : index
    %29 = vector.load %arg5[%c0_13, %c0_14] : memref<2x128xf32, #tpu.memory_space<vmem>>, vector<2x128xf32>
    tpu.vector_store %arg5[%c0_13, %c0_14], %28 {strides = array<i32>} : memref<2x128xf32, #tpu.memory_space<vmem>>, vector<2x128xf32>,
    %c0_i32_15 = arith.constant 0 : i32
    %30 = arith.cmpi eq, %arg0, %c0_i32_15 : i32
    %31 = arith.extui %30 : i1 to i32
    %c0_i32_16 = arith.constant 0 : i32
    %32 = arith.cmpi ne, %31, %c0_i32_16 : i32
    scf.if %32 {
      %c0_17 = arith.constant 0 : index
      %c0_18 = arith.constant 0 : index
      %33 = vector.load %arg5[%c0_17, %c0_18] : memref<2x128xf32, #tpu.memory_space<vmem>>, vector<2x128xf32>
      %34 = vector.extract_strided_slice %33 {offsets = [0, 0], sizes = [1, 128], strides = [1, 1]} : vector<2x128xf32> to vector<1x128xf32>
      %cst_19 = arith.constant 6.250000e-02 : f32
      %35 = vector.broadcast %cst_19 : f32 to vector<1x128xf32>
      %36 = arith.mulf %34, %35 : vector<1x128xf32>
      %37 = vector.extract_strided_slice %33 {offsets = [1, 0], sizes = [1, 128], strides = [1, 1]} : vector<2x128xf32> to vector<1x128xf32>
      %cst_20 = arith.constant 6.250000e-02 : f32
      %38 = vector.broadcast %cst_20 : f32 to vector<1x128xf32>
      %39 = arith.mulf %37, %38 : vector<1x128xf32>
      %40 = arith.mulf %36, %36 : vector<1x128xf32>
      %41 = arith.subf %39, %40 : vector<1x128xf32>
      %cst_21 = arith.constant 9.99999974E-6 : f32
      %42 = vector.broadcast %cst_21 : f32 to vector<1x128xf32>
      %43 = arith.addf %41, %42 : vector<1x128xf32>
      %44 = math.rsqrt %43 : vector<1x128xf32>
      %45 = tpu.concatenate %36, %44 in 0 : vector<1x128xf32>, vector<1x128xf32> -> vector<2x128xf32>
      %c0_22 = arith.constant 0 : index
      %c0_23 = arith.constant 0 : index
      %46 = vector.load %arg5[%c0_22, %c0_23] : memref<2x128xf32, #tpu.memory_space<vmem>>, vector<2x128xf32>
      tpu.vector_store %arg5[%c0_22, %c0_23], %45 {strides = array<i32>} : memref<2x128xf32, #tpu.memory_space<vmem>>, vector<2x128xf32>,
    } else {
    }
    return
  }
  func.func @transform_0(%arg0: i32) -> (i32, i32) {
    %c0_i32 = arith.constant 0 : i32
    %c0_i32_0 = arith.constant 0 : i32
    return %arg0, %c0_i32 : i32, i32
  }
  func.func @transform_1(%arg0: i32) -> (i32, i32) {
    %c0_i32 = arith.constant 0 : i32
    %c0_i32_0 = arith.constant 0 : i32
    %c0_i32_1 = arith.constant 0 : i32
    return %c0_i32, %c0_i32_0 : i32, i32
  }
  func.func @transform_2(%arg0: i32) -> (i32, i32) {
    %c0_i32 = arith.constant 0 : i32
    %c0_i32_0 = arith.constant 0 : i32
    %c0_i32_1 = arith.constant 0 : i32
    return %c0_i32, %c0_i32_0 : i32, i32
  }
  func.func @transform_3(%arg0: i32) -> (i32, i32) {
    %c0_i32 = arith.constant 0 : i32
    %c0_i32_0 = arith.constant 0 : i32
    return %arg0, %c0_i32 : i32, i32
  }
  func.func @transform_4(%arg0: i32) -> (i32, i32) {
    %c0_i32 = arith.constant 0 : i32
    %c0_i32_0 = arith.constant 0 : i32
    %c0_i32_1 = arith.constant 0 : i32
    return %c0_i32, %c0_i32_0 : i32, i32
  }
}

</mosaic_0001>

<llo_original>
// kernel: tpu_custom_call.1
$region0: #{tpu_custom_call.1}
  #allocation0 [shape = 'u32[]', space=smem, size = 0x4, offset = 0x4, fixed_abs, tag = 'smem constant byte address 0x4 - core index']
  #allocation1 [shape = 'u32[144,128]{1,0:T(1,128)}', space=vmem, size = 0x12000, scoped, tag = 'internal scratch']
  %s0 = inlined_call_operand.hbm [shape: f32[16,128], index: 0, kind: input, shape index: {}]
  %s1 = inlined_call_operand.hbm [shape: f32[128,128], index: 1, kind: input, shape index: {}]
  %s2 = inlined_call_operand.vmem [shape: f32[1,128], index: 2, kind: input, shape index: {}]
  %s3 = inlined_call_operand.hbm [shape: f32[16,128], index: 3, kind: output, shape index: {0}]
  %s4 = inlined_call_operand.hbm [shape: f32[2,128], index: 4, kind: output, shape index: {1}]
  %5 = xla_tuple %s3, %s4
  %s6 = sld [smem:[#allocation0]]
  $region46: #{tpu_custom_call.1} parent=0
    _
  %s8 = ssub.s32 1, %s6
  %s9 = scalar_select 0, %s8, %s6
  $region1: #{tpu_custom_call.1} parent=0
    #allocation2 [shape = 'u8[8192]{0}', space=vmem, size = 0x2000, scoped, tag = 'input window, operand 0, single buffered']
    #allocation3 [shape = 's32[1]{0}', space=sflag, size = 0x4, scoped, tag = 'scoped memory for tpu_custom_call.1']
    #allocation4 [shape = 's32[1]{0}', space=sflag, size = 0x4, scoped, tag = 'scoped memory for tpu_custom_call.1']
    #allocation5 [shape = 'u8[65536]{0}', space=vmem, size = 0x10000, scoped, tag = 'input window, operand 1, single buffered']
    #allocation6 [shape = 's32[1]{0}', space=sflag, size = 0x4, scoped, tag = 'scoped memory for tpu_custom_call.1']
    #allocation7 [shape = 'u8[8192]{0}', space=vmem, size = 0x2000, scoped, tag = 'output window, operand 0, single buffered']
    #allocation8 [shape = 'u8[1024]{0}', space=vmem, size = 0x400, scoped, tag = 'output window, operand 1, single buffered']
    #allocation9 [shape = 's32[1]{0}', space=sflag, size = 0x4, scoped, tag = 'scoped memory for tpu_custom_call.1']
    %10 = vsyncpa [#allocation3], 0
    %11 = vsyncpa [#allocation6], 0
    %12 = vsyncpa [#allocation4], 0
    %13 = vsyncpa [#allocation9], 0
    // Predicated region
    $region2: #{tpu_custom_call.1} parent=1 // pred_check
      _
    $region3: #{tpu_custom_call.1} parent=1 // pred_check_branch
      %15 = sbr.rel (0) target = $region5
    $region4: #{tpu_custom_call.1} parent=1 // pred_region
      %s17 = ssub.s32 256, 256
      %18 = vsyncadd [#allocation3], %s17
      %s19 = sshll.u32 [#allocation2], 4
      %s20 = int_to_ptr.vmem [resolvable:$true] %s19
      %25 = dma.hbm_to_vmem [thread:$0]  %s0, 256, %s20, [#allocation3], 128, 128, 8
    $region5: #{tpu_custom_call.1} parent=1 // pred_fallthru
      _
    // Predicated region
    $region6: #{tpu_custom_call.1} parent=1 // pred_check
      _
    $region7: #{tpu_custom_call.1} parent=1 // pred_check_branch
      %27 = sbr.rel (0) target = $region9
    $region8: #{tpu_custom_call.1} parent=1 // pred_region
      %s29 = ssub.s32 2048, 2048
      %30 = vsyncadd [#allocation6], %s29
      %s31 = sshll.u32 [#allocation5], 4
      %s32 = int_to_ptr.vmem [resolvable:$true] %s31
      %37 = dma.hbm_to_vmem [thread:$0]  %s1, 2048, %s32, [#allocation6], 128, 128, 8
    $region9: #{tpu_custom_call.1} parent=1 // pred_fallthru
      _
    // Predicated region
    $region10: #{tpu_custom_call.1} parent=1 // pred_check
      _
    $region11: #{tpu_custom_call.1} parent=1 // pred_check_branch
      %39 = sbr.rel (0) target = $region13
    $region12: #{tpu_custom_call.1} parent=1 // pred_region
      _
    $region13: #{tpu_custom_call.1} parent=1 // pred_fallthru
      _
    // Predicated region
    $region14: #{tpu_custom_call.1} parent=1 // pred_check
      _
    $region15: #{tpu_custom_call.1} parent=1 // pred_check_branch
      %41 = sbr.rel (0) target = $region17
    $region16: #{tpu_custom_call.1} parent=1 // pred_region
      %42 = dma.done [#allocation3], 256
    $region17: #{tpu_custom_call.1} parent=1 // pred_fallthru
      _
    // Predicated region
    $region18: #{tpu_custom_call.1} parent=1 // pred_check
      _
    $region19: #{tpu_custom_call.1} parent=1 // pred_check_branch
      %44 = sbr.rel (0) target = $region21
    $region20: #{tpu_custom_call.1} parent=1 // pred_region
      %45 = dma.done [#allocation6], 2048
    $region21: #{tpu_custom_call.1} parent=1 // pred_fallthru
      _
    %p47 = scmp.eq.s32.totalorder 0, 0
    // Predicated region
    $region22: #{tpu_custom_call.1} parent=1 // pred_check
      %p48 = pneg %p47
    $region23: #{tpu_custom_call.1} parent=1 // pred_check_branch
      %50 = sbr.rel (%p48) target = $region25
    $region24: #{tpu_custom_call.1} parent=1 // pred_region
      %51 = vst [vmem:[#allocation8] sm:$0x3] 0.0
    $region25: #{tpu_custom_call.1} parent=1 // pred_fallthru
      _
    %v52 = vld [vmem:[#allocation2] sm:$0xff]
    %v53 = vld [vmem:[#allocation2 + $0x8] sm:$0xff]
    %v54 = vpack.c.bf16 %v53, %v52
    %v55 = vld [vmem:[#allocation5] sm:$0xff]
    %v56 = vld [vmem:[#allocation5 + $0x8] sm:$0xff]
    %v57 = vld [vmem:[#allocation5 + $0x10] sm:$0xff]
    %v58 = vld [vmem:[#allocation5 + $0x18] sm:$0xff]
    %v59 = vld [vmem:[#allocation5 + $0x20] sm:$0xff]
    %v60 = vld [vmem:[#allocation5 + $0x28] sm:$0xff]
    %v61 = vld [vmem:[#allocation5 + $0x30] sm:$0xff]
    %v62 = vld [vmem:[#allocation5 + $0x38] sm:$0xff]
    %v63 = vld [vmem:[#allocation5 + $0x40] sm:$0xff]
    %v64 = vld [vmem:[#allocation5 + $0x48] sm:$0xff]
    %v65 = vld [vmem:[#allocation5 + $0x50] sm:$0xff]
    %v66 = vld [vmem:[#allocation5 + $0x58] sm:$0xff]
    %v67 = vld [vmem:[#allocation5 + $0x60] sm:$0xff]
    %v68 = vld [vmem:[#allocation5 + $0x68] sm:$0xff]
    %v69 = vld [vmem:[#allocation5 + $0x70] sm:$0xff]
    %v70 = vld [vmem:[#allocation5 + $0x78] sm:$0xff]
    %v71 = vpack.c.bf16 %v56, %v55
    %v72 = vpack.c.bf16 %v58, %v57
    %v73 = vpack.c.bf16 %v60, %v59
    %v74 = vpack.c.bf16 %v62, %v61
    %v75 = vpack.c.bf16 %v64, %v63
    %v76 = vpack.c.bf16 %v66, %v65
    %v77 = vpack.c.bf16 %v68, %v67
    %v78 = vpack.c.bf16 %v70, %v69
    %v79 = vld [vmem:[%s2] sm:$0x1]
    %v81 = vlaneseq
    %v82 = vshrl.u32 %v81, 7
    %v83 = vsub.s32 0, %v82
    %v84 = vrot.slane %v79, %v83
    %86 = vmatprep.subr.bf16.mxu0 0
    %87 = vmatpush1.bf16.msra.mxu0 %v78
    %88 = vmatprep.subr.bf16.mxu0 0
    %89 = vmatpush1.bf16.msra.mxu0 %v77
    %90 = vmatprep.subr.bf16.mxu0 0
    %91 = vmatpush1.bf16.msra.mxu0 %v76
    %92 = vmatprep.subr.bf16.mxu0 0
    %93 = vmatpush1.bf16.msra.mxu0 %v75
    %94 = vmatprep.subr.bf16.mxu0 0
    %95 = vmatpush1.bf16.msra.mxu0 %v74
    %96 = vmatprep.subr.bf16.mxu0 0
    %97 = vmatpush1.bf16.msra.mxu0 %v73
    %98 = vmatprep.subr.bf16.mxu0 0
    %99 = vmatpush1.bf16.msra.mxu0 %v72
    %100 = vmatprep.subr.bf16.mxu0 0
    %101 = vmatpush1.bf16.msra.mxu0 %v71
    %102 = vmatprep.subr.bf16.mxu0 0
    %103 = vmatpush2.bf16.msra.mxu0 0
    %104 = vmatprep.subr.bf16.mxu0 0
    %105 = vmatpush2.bf16.msra.mxu0 0
    %106 = vmatprep.subr.bf16.mxu0 0
    %107 = vmatpush2.bf16.msra.mxu0 0
    %108 = vmatprep.subr.bf16.mxu0 0
    %109 = vmatpush2.bf16.msra.mxu0 0
    %110 = vmatprep.subr.bf16.mxu0 0
    %111 = vmatpush2.bf16.msra.mxu0 0
    %112 = vmatprep.subr.bf16.mxu0 0
    %113 = vmatpush2.bf16.msra.mxu0 0
    %114 = vmatprep.subr.bf16.mxu0 0
    %115 = vmatpush2.bf16.msra.mxu0 0
    %116 = vmatprep.subr.bf16.mxu0 0
    %117 = vmatpush2.bf16.msra.mxu0 0
    %118 = vmatprep.mubr.bf16.mxu0 0
    %119 = vmatmul.mubr.bf16.gmra.mxu0 %v54
    %v120 = vpop.f32.mrf.mxu0
    %v121 = vadd.f32 %v84, %v120
    %v122 = vpop.f32.mrf.mxu0
    %v123 = vpop.f32.mrf.mxu0
    %v124 = vadd.f32 %v84, %v123
    %v125 = vpop.f32.mrf.mxu0
    %126 = vdwg.mxu0
    %127 = vst [vmem:[#allocation7] sm:$0xff] %v121
    %128 = vst [vmem:[#allocation7 + $0x8] sm:$0xff] %v124
    %v129 = vlaneseq
    %v130 = vshrl.u32 %v129, 7
    %v131 = vadd.s32 %v130, 8
    %s132 = smul.u32 0, 16
    %v133 = vstv %s132
    %v134 = vadd.s32 %v130, %v133
    %v135 = vadd.s32 %v131, %v133
    %vm136 = vcmp.lt.s32.totalorder %v134, 16
    %vm137 = vcmp.lt.s32.totalorder %v135, 16
    %v138 = vsel %vm136, 1, 0
    %v139 = vsel %vm137, 1, 0
    %v140 = vcvt.s32.f32 %v138
    %v141 = vcvt.s32.f32 %v139
    %v142 = vmul.f32 %v121, %v140
    %v143 = vmul.f32 %v124, %v141
    %v144 = vadd.f32 %v142, %v143
    %v145 = vrot.slane %v144, 4
    %v146 = vadd.f32 %v144, %v145
    %v147 = vrot.slane %v146, 2
    %v148 = vadd.f32 %v146, %v147
    %v149 = vrot.slane %v148, 1
    %v150 = vadd.f32 %v148, %v149
    %v151 = vmul.f32 %v142, %v121
    %v152 = vmul.f32 %v143, %v124
    %v153 = vadd.f32 %v151, %v152
    %v154 = vrot.slane %v153, 4
    %v155 = vadd.f32 %v153, %v154
    %v156 = vrot.slane %v155, 2
    %v157 = vadd.f32 %v155, %v156
    %v158 = vrot.slane %v157, 1
    %v159 = vadd.f32 %v157, %v158
    %v160 = vld [vmem:[#allocation8] sm:$0x3]
    %vm161 = vcmask 1040384
    %v162 = vsel %vm161, %v150, %v159
    %v163 = vadd.f32 %v160, %v162
    %164 = vst [vmem:[#allocation8] sm:$0x3] %v163
    // Predicated region
    $region26: #{tpu_custom_call.1} parent=1 // pred_check
      %p165 = pneg %p47
    $region27: #{tpu_custom_call.1} parent=1 // pred_check_branch
      %167 = sbr.rel (%p165) target = $region29
    $region28: #{tpu_custom_call.1} parent=1 // pred_region
      %v168 = vld [vmem:[#allocation8] sm:$0x3]
      %v169 = vmul.f32 %v168, 0.0625
      %v170 = vmul.f32 %v169, %v169
      %v172 = vrot.slane %v170, 7
      %v174 = vsub.f32 %v169, %v172
      %v175 = vadd.f32 %v174, 1e-05
      %v176 = vrsqrt.pop %v175
      %v177 = vsel %vm161, %v169, %v176
      %178 = vst [vmem:[#allocation8] sm:$0x3] %v177
    $region29: #{tpu_custom_call.1} parent=1 // pred_fallthru
      _
    // Predicated region
    $region30: #{tpu_custom_call.1} parent=1 // pred_check
      _
    $region31: #{tpu_custom_call.1} parent=1 // pred_check_branch
      %180 = sbr.rel (0) target = $region33
    $region32: #{tpu_custom_call.1} parent=1 // pred_region
      %s182 = ssub.s32 256, 256
      %183 = vsyncadd [#allocation4], %s182
      %s184 = sshll.u32 [#allocation7], 4
      %s185 = int_to_ptr.vmem [resolvable:$true] %s184
      %190 = dma.vmem_to_hbm [thread:$0]  %s185, 256, %s3, [#allocation4], 128, 128, 8
    $region33: #{tpu_custom_call.1} parent=1 // pred_fallthru
      _
    // Predicated region
    $region34: #{tpu_custom_call.1} parent=1 // pred_check
      _
    $region35: #{tpu_custom_call.1} parent=1 // pred_check_branch
      %192 = sbr.rel (0) target = $region37
    $region36: #{tpu_custom_call.1} parent=1 // pred_region
      %s194 = ssub.s32 32, 32
      %195 = vsyncadd [#allocation9], %s194
      %s197 = sshll.u32 [#allocation8], 4
      %s198 = int_to_ptr.vmem [resolvable:$true] %s197
      %200 = dma.vmem_to_hbm [thread:$0]  %s198, 32, %s4, [#allocation9]
    $region37: #{tpu_custom_call.1} parent=1 // pred_fallthru
      _
    // Predicated region
    $region38: #{tpu_custom_call.1} parent=1 // pred_check
      _
    $region39: #{tpu_custom_call.1} parent=1 // pred_check_branch
      %202 = sbr.rel (0) target = $region41
    $region40: #{tpu_custom_call.1} parent=1 // pred_region
      %203 = dma.done [#allocation4], 256
    $region41: #{tpu_custom_call.1} parent=1 // pred_fallthru
      _
    // Predicated region
    $region42: #{tpu_custom_call.1} parent=1 // pred_check
      _
    $region43: #{tpu_custom_call.1} parent=1 // pred_check_branch
      %205 = sbr.rel (0) target = $region45
    $region44: #{tpu_custom_call.1} parent=1 // pred_region
      %206 = dma.done [#allocation9], 32
    $region45: #{tpu_custom_call.1} parent=1 // pred_fallthru
      _
    %207 = vsyncpa [#allocation3], 1
    %208 = vsyncpa [#allocation6], 1
    %209 = vsyncpa [#allocation4], 1
    %210 = vsyncpa [#allocation9], 1

</llo_original>
